<compile_context>
chip_gen: v6e
topology: v6e:2x2x1
jax: 0.10.0
libtpu: 0.0.40
codegen_flags: <defaults>
</compile_context>

<pallas_src>
import jax
import jax.numpy as jnp
from jax import lax
from jax.experimental import pallas as pl
from jax.experimental.pallas import tpu as pltpu

_TARGET_BLOCK_BYTES = 4 * 1024 * 1024   # per block per ref (in + out, x2 buffers -> 16 MiB VMEM)
_MIN_SPLIT_BYTES = 1 * 1024 * 1024      # above this, force >=2 grid steps (v7x dual TC)
_VMEM_LIMIT_BYTES = 32 * 1024 * 1024    # explicit scoped-VMEM limit: safe on v5e/v6e/v7x
_LANE_WIDTHS = (1024, 512, 256, 128)    # candidate lane-dense widths (multiples of 128)


def _relu_kernel(x_ref, o_ref):
    # Pure VPU elementwise: max(x, 0) in the ref's native dtype.
    x = x_ref[...]
    o_ref[...] = jnp.maximum(x, jnp.zeros_like(x))


def _relu_tiled(flat: jax.Array) -> jax.Array:
    """Elementwise ReLU over a flat 1-D array via a tiled, lane-dense Pallas kernel."""
    m = flat.shape[0]
    itemsize = flat.dtype.itemsize
    # Sublane packing multiple per element width (f32: 8, bf16: 16, int8: 32).
    sub = {4: 8, 2: 16, 1: 32}.get(itemsize, 8)

    # Pick the widest lane-dense view that divides the flat length exactly; only
    # pad (rare) when not even a multiple of 128.
    lane_w = None
    for w in _LANE_WIDTHS:
        if m % w == 0:
            lane_w = w
            break
    if lane_w is None:
        lane_w = 128
        m_pad = pl.cdiv(m, lane_w) * lane_w
        flat = jnp.pad(flat, (0, m_pad - m))
    else:
        m_pad = m
    rows = m_pad // lane_w
    x2 = flat.reshape(rows, lane_w)

    # Block rows targeting ~4 MiB per block per ref, kept a multiple of the
    # sublane packing so (sub, 128)-divisibility holds for ragged tails.
    target_rows = max(sub, (_TARGET_BLOCK_BYTES // (lane_w * itemsize)) // sub * sub)
    if rows > target_rows:
        tile_r = target_rows
    elif rows >= 2 * sub and rows * lane_w * itemsize >= _MIN_SPLIT_BYTES:
        # Would be a single block: split into >=2 grid steps so both v7x
        # TensorCores (grid axis is "parallel") can pull from HBM.
        tile_r = ((pl.cdiv(rows, 2) + sub - 1) // sub) * sub
    else:
        tile_r = rows  # single full-array block (block == full dims is always legal)

    grid = (pl.cdiv(rows, tile_r),)
    spec = pl.BlockSpec((tile_r, lane_w), lambda i: (i, 0))

    out2 = pl.pallas_call(
        _relu_kernel,
        out_shape=jax.ShapeDtypeStruct((rows, lane_w), flat.dtype),
        grid=grid,
        in_specs=[spec],
        out_specs=spec,
        compiler_params=pltpu.CompilerParams(
            dimension_semantics=("parallel",),
            vmem_limit_bytes=_VMEM_LIMIT_BYTES,
        ),
        cost_estimate=pl.CostEstimate(
            flops=m_pad,
            transcendentals=0,
            bytes_accessed=2 * m_pad * itemsize,  # read + write of the slab
        ),
    )(x2)

    out_flat = out2.reshape(-1)
    if m_pad != m:
        out_flat = out_flat[:m]
    return out_flat


def c_relu(x: jax.Array) -> jax.Array:
    """Complex ReLU: relu(Re(x)) + 1j * relu(Im(x)). x may be any shape/dtype."""
    if jnp.issubdtype(x.dtype, jnp.complexfloating):
        if x.dtype != jnp.complex64:
            # TODO(synk): complex128 is downcast to complex64 (f64 Pallas is not
            # practical on TPU); callers needing f64 precision must handle it.
            x = x.astype(jnp.complex64)
        if x.size == 0:
            return x
        # Split once in the wrapper (Pallas refs cannot be complex), run ONE
        # elementwise pass over the contiguous (2, ...) f32 slab, recombine.
        pairs = jnp.stack([jnp.real(x), jnp.imag(x)], axis=0)  # (2, *x.shape) f32
        out = _relu_tiled(pairs.reshape(-1)).reshape(pairs.shape)
        return lax.complex(out[0], out[1])

    # Real-valued fallback.
    if x.size == 0:
        return x
    if x.dtype in (jnp.float32, jnp.bfloat16, jnp.int32):
        # Native-dtype kernel path: no astype round trip (HBM traffic stays 1x).
        return _relu_tiled(x.reshape(-1)).reshape(x.shape)
    # Other dtypes (f16/f64/small ints): plain XLA max — avoids precision-losing
    # float32 round trips and unsupported-dtype Pallas lowerings.
    return jnp.maximum(x, jnp.zeros_like(x))


class CReLU:
    """JAX/Pallas equivalent of the PyTorch CReLU module."""

    def __init__(self, inplace: bool = False):
        # `inplace` has no meaning under JAX's functional semantics.
        self.inplace = inplace

    def __call__(self, x: jax.Array) -> jax.Array:
        return c_relu(x)


if __name__ == "__main__":
    key = jax.random.PRNGKey(0)
    k_re, k_im = jax.random.split(key)
    B, C, H, W = 2, 4, 16, 16  # NCHW, matches conv-style inputs
    x_re = jax.random.normal(k_re, (B, C, H, W), dtype=jnp.float32)
    x_im = jax.random.normal(k_im, (B, C, H, W), dtype=jnp.float32)
    x = lax.complex(x_re, x_im)  # complex64

    mod = CReLU()
    out = jax.block_until_ready(mod(x))

    # Reference check (pure JAX): relu applied independently to re / im.
    ref = lax.complex(jnp.maximum(x_re, 0.0), jnp.maximum(x_im, 0.0))
    assert out.shape == x.shape and out.dtype == x.dtype
    assert jnp.allclose(out, ref, atol=1e-6, rtol=1e-6)

    # Also exercise the native real-dtype paths (f32 and bf16).
    y = jax.random.normal(key, (8, 32), dtype=jnp.float32)
    out_y = jax.block_until_ready(mod(y))
    assert jnp.allclose(out_y, jnp.maximum(y, 0.0), atol=1e-6, rtol=1e-6)

    yb = y.astype(jnp.bfloat16)
    out_yb = jax.block_until_ready(mod(yb))
    assert out_yb.dtype == jnp.bfloat16
    assert jnp.allclose(out_yb.astype(jnp.float32),
                        jnp.maximum(yb, jnp.zeros_like(yb)).astype(jnp.float32))

    print("KERNEL_OK")
</pallas_src>

<mosaic_0001>
module attributes {stable_mosaic.version = 11 : i64} {
  func.func @_relu_kernel(%arg0: i32, %arg1: memref<4x1024xf32, #tpu.memory_space<vmem>>, %arg2: memref<4x1024xf32, #tpu.memory_space<vmem>>) attributes {dimension_semantics = [#tpu.dimension_semantics<parallel>], iteration_bounds = array<i64: 1>, scalar_prefetch = 0 : i64, scratch_operands = 0 : i64, tpu.core_type = #tpu.core_type<tc>, window_params = [{transform_indices = @transform_0, window_bounds = array<i64: 4, 1024>}, {transform_indices = @transform_1, window_bounds = array<i64: 4, 1024>}]} {
    %c0 = arith.constant 0 : index
    %c0_0 = arith.constant 0 : index
    %0 = vector.load %arg1[%c0, %c0_0] : memref<4x1024xf32, #tpu.memory_space<vmem>>, vector<4x1024xf32>
    %cst = arith.constant 0.000000e+00 : f32
    %1 = vector.broadcast %cst : f32 to vector<4x1024xf32>
    %2 = arith.maximumf %0, %1 : vector<4x1024xf32>
    %c0_1 = arith.constant 0 : index
    %c0_2 = arith.constant 0 : index
    %3 = vector.load %arg2[%c0_1, %c0_2] : memref<4x1024xf32, #tpu.memory_space<vmem>>, vector<4x1024xf32>
    tpu.vector_store %arg2[%c0_1, %c0_2], %2 {strides = array<i32>} : memref<4x1024xf32, #tpu.memory_space<vmem>>, vector<4x1024xf32>,
    return
  }
  func.func @transform_0(%arg0: i32) -> (i32, i32) {
    %c0_i32 = arith.constant 0 : i32
    %c0_i32_0 = arith.constant 0 : i32
    return %arg0, %c0_i32 : i32, i32
  }
  func.func @transform_1(%arg0: i32) -> (i32, i32) {
    %c0_i32 = arith.constant 0 : i32
    %c0_i32_0 = arith.constant 0 : i32
    return %arg0, %c0_i32 : i32, i32
  }
}

</mosaic_0001>

<llo_original>
// kernel: tpu_custom_call.1
$region0: #{tpu_custom_call.1}
  #allocation0 [shape = 'u32[]', space=smem, size = 0x4, offset = 0x4, fixed_abs, tag = 'smem constant byte address 0x4 - core index']
  #allocation1 [shape = 'u32[144,128]{1,0:T(1,128)}', space=vmem, size = 0x12000, scoped, tag = 'internal scratch']
  %s0 = inlined_call_operand.hbm [shape: f32[4,1024], index: 0, kind: input, shape index: {}]
  %s1 = inlined_call_operand.hbm [shape: f32[4,1024], index: 1, kind: output, shape index: {}]
  %s2 = sld [smem:[#allocation0]]
  $region18: #{tpu_custom_call.1} parent=0
    _
  %s4 = ssub.s32 1, %s2
  %s5 = scalar_select 0, %s4, %s2
  $region1: #{tpu_custom_call.1} parent=0
    #allocation2 [shape = 'u8[16384]{0}', space=vmem, size = 0x4000, scoped, tag = 'input window, operand 0, single buffered']
    #allocation3 [shape = 's32[1]{0}', space=sflag, size = 0x4, scoped, tag = 'scoped memory for tpu_custom_call.1']
    #allocation4 [shape = 's32[1]{0}', space=sflag, size = 0x4, scoped, tag = 'scoped memory for tpu_custom_call.1']
    #allocation5 [shape = 'u8[16384]{0}', space=vmem, size = 0x4000, scoped, tag = 'output window, operand 0, single buffered']
    %6 = vsyncpa [#allocation3], 0
    %7 = vsyncpa [#allocation4], 0
    // Predicated region
    $region2: #{tpu_custom_call.1} parent=1 // pred_check
      _
    $region3: #{tpu_custom_call.1} parent=1 // pred_check_branch
      %9 = sbr.rel (0) target = $region5
    $region4: #{tpu_custom_call.1} parent=1 // pred_region
      %s11 = ssub.s32 512, 512
      %12 = vsyncadd [#allocation3], %s11
      %s14 = sshll.u32 [#allocation2], 4
      %s15 = int_to_ptr.vmem [resolvable:$true] %s14
      %17 = dma.hbm_to_vmem [thread:$0]  %s0, 512, %s15, [#allocation3]
    $region5: #{tpu_custom_call.1} parent=1 // pred_fallthru
      _
    // Predicated region
    $region6: #{tpu_custom_call.1} parent=1 // pred_check
      _
    $region7: #{tpu_custom_call.1} parent=1 // pred_check_branch
      %19 = sbr.rel (0) target = $region9
    $region8: #{tpu_custom_call.1} parent=1 // pred_region
      %20 = dma.done [#allocation3], 512
    $region9: #{tpu_custom_call.1} parent=1 // pred_fallthru
      _
    %v21 = vld [vmem:[#allocation2] sm:$0xff]
    %v22 = vld [vmem:[#allocation2 + $0x8] sm:$0xff]
    %v23 = vld [vmem:[#allocation2 + $0x10] sm:$0xff]
    %v24 = vld [vmem:[#allocation2 + $0x18] sm:$0xff]
    %v25 = vmax.f32 %v21, 0.0
    %v26 = vmax.f32 %v22, 0.0
    %v27 = vmax.f32 %v23, 0.0
    %v28 = vmax.f32 %v24, 0.0
    %29 = vst [vmem:[#allocation5] sm:$0xff] %v25
    %30 = vst [vmem:[#allocation5 + $0x8] sm:$0xff] %v26
    %31 = vst [vmem:[#allocation5 + $0x10] sm:$0xff] %v27
    %32 = vst [vmem:[#allocation5 + $0x18] sm:$0xff] %v28
    // Predicated region
    $region10: #{tpu_custom_call.1} parent=1 // pred_check
      _
    $region11: #{tpu_custom_call.1} parent=1 // pred_check_branch
      %34 = sbr.rel (0) target = $region13
    $region12: #{tpu_custom_call.1} parent=1 // pred_region
      %s36 = ssub.s32 512, 512
      %37 = vsyncadd [#allocation4], %s36
      %s39 = sshll.u32 [#allocation5], 4
      %s40 = int_to_ptr.vmem [resolvable:$true] %s39
      %42 = dma.vmem_to_hbm [thread:$0]  %s40, 512, %s1, [#allocation4]
    $region13: #{tpu_custom_call.1} parent=1 // pred_fallthru
      _
    // Predicated region
    $region14: #{tpu_custom_call.1} parent=1 // pred_check
      _
    $region15: #{tpu_custom_call.1} parent=1 // pred_check_branch
      %44 = sbr.rel (0) target = $region17
    $region16: #{tpu_custom_call.1} parent=1 // pred_region
      %45 = dma.done [#allocation4], 512
    $region17: #{tpu_custom_call.1} parent=1 // pred_fallthru
      _
    %46 = vsyncpa [#allocation3], 1
    %47 = vsyncpa [#allocation4], 1

</llo_original>
